<compile_context>
chip_gen: v5e
topology: v5e:2x2
jax: 0.10.0
libtpu: 0.0.40
codegen_flags: <defaults>
</compile_context>

<pallas_src>
import functools

import jax
import jax.numpy as jnp
from jax import lax
from jax.experimental import pallas as pl
from jax.experimental.pallas import tpu as pltpu

EPS = 1e-5  # PyTorch BatchNorm2d default


# ---------------------------------------------------------------------------
# In-kernel helpers
# ---------------------------------------------------------------------------
def _channel_mix(w, xs, cin, cout):
    """(cout, cin) @ (cin, M) -> (cout, M).  VPU broadcast-MACs for tiny channels."""
    if cin <= 32 and cout <= 128:
        acc = w[:, 0:1] * xs[0:1, :]
        for ci in range(1, cin):
            acc = acc + w[:, ci:ci + 1] * xs[ci:ci + 1, :]
        return acc
    return jnp.dot(w, xs, preferred_element_type=jnp.float32)


def _conv1x1(in_refs, apply_sel, cin, cout):
    """Strided 1x1 conv for the current batch block -> (cout, Ho*Wo) float32."""
    if apply_sel:
        x_ref, s_ref, w_ref = in_refs
        # Spatial subsample via 0/1 selection matmul (lanes stay dense, MXU is idle).
        xs = jnp.dot(x_ref[0], s_ref[...], preferred_element_type=jnp.float32)
    else:
        x_ref, w_ref = in_refs
        xs = x_ref[0]
    return _channel_mix(w_ref[...], xs, cin, cout)


# ---------------------------------------------------------------------------
# Pass 1: per-batch partial (sum, sum of squares) of the conv output channels.
# ---------------------------------------------------------------------------
def stats_kernel(*refs, apply_sel, cin, cout):
    st_ref = refs[-1]
    y = _conv1x1(refs[:-1], apply_sel, cin, cout)         # (cout, M)
    s1 = jnp.sum(y, axis=1, keepdims=True)                # (cout, 1)
    s2 = jnp.sum(y * y, axis=1, keepdims=True)            # (cout, 1)
    st_ref[0] = jnp.concatenate([s1, s2], axis=1)         # (cout, 2) partial stats


# ---------------------------------------------------------------------------
# Pass 2: recompute conv from x and apply folded BN (scale, shift) as one MAD.
# ---------------------------------------------------------------------------
def norm_kernel(*refs, apply_sel, cin, cout):
    aff_ref, o_ref = refs[-2], refs[-1]
    y = _conv1x1(refs[:-2], apply_sel, cin, cout)          # (cout, M)
    a = aff_ref[...]                                       # (cout, 2): [scale, shift]
    o_ref[0] = y * a[:, 0:1] + a[:, 1:2]


# ---------------------------------------------------------------------------
# Wrapper
# ---------------------------------------------------------------------------
def _selection_matrix(h, w, stride):
    ho = (h - 1) // stride + 1
    wo = (w - 1) // stride + 1
    src = (jnp.arange(ho) * stride)[:, None] * w + (jnp.arange(wo) * stride)[None, :]
    src = src.reshape(-1)                                  # flat input index per output pos
    return (jnp.arange(h * w)[:, None] == src[None, :]).astype(jnp.float32)


@functools.partial(jax.jit, static_argnums=(2,))
def shortcut_layer_forward(x_nchw, weight, stride):
    """x_nchw: (N, Cin, H, W) f32.  weight: (Cout, Cin, 1, 1) f32."""
    n, cin, h, w = x_nchw.shape
    cout = weight.shape[0]
    ho = (h - 1) // stride + 1
    wo = (w - 1) // stride + 1
    hw = h * w
    m = ho * wo

    # Free, contiguity-preserving reshapes only (no transposes, no strided copies).
    x_flat = x_nchw.reshape(n, cin, hw)                    # lanes = H*W (lane-dense)
    w_mat = weight.reshape(cout, cin)

    apply_sel = stride > 1
    sel_args, sel_specs = [], []
    if apply_sel:
        sel_args = [_selection_matrix(h, w, stride)]
        sel_specs = [pl.BlockSpec((hw, m), lambda i: (0, 0))]       # resident

    x_spec = pl.BlockSpec((1, cin, hw), lambda i: (i, 0, 0))
    w_spec = pl.BlockSpec((cout, cin), lambda i: (0, 0))            # resident
    cparams = pltpu.CompilerParams(
        dimension_semantics=("parallel",),                 # both TCs usable on v7x
        vmem_limit_bytes=32 * 1024 * 1024,
    )

    # --- pass 1: stats only (no y HBM round-trip) ---
    stats = pl.pallas_call(
        functools.partial(stats_kernel, apply_sel=apply_sel, cin=cin, cout=cout),
        out_shape=jax.ShapeDtypeStruct((n, cout, 2), jnp.float32),
        grid_spec=pltpu.PrefetchScalarGridSpec(
            num_scalar_prefetch=0,
            grid=(n,),
            in_specs=[x_spec] + sel_specs + [w_spec],
            out_specs=pl.BlockSpec((1, cout, 2), lambda i: (i, 0, 0)),
        ),
        compiler_params=cparams,
    )(x_flat, *sel_args, w_mat)

    # --- tiny O(Cout) glue: fold batch stats into (scale, shift) once ---
    m_total = jnp.float32(n * m)
    tot = jnp.sum(stats, axis=0)                                    # (cout, 2)
    mean = tot[:, 0] / m_total
    var = jnp.maximum(tot[:, 1] / m_total - mean * mean, 0.0)       # clamp: cancellation guard
    inv_std = lax.rsqrt(var + EPS)
    affine = jnp.stack([inv_std, -mean * inv_std], axis=1)          # (cout, 2)

    # --- pass 2: fused conv-recompute + normalize, lane-dense NCHW output ---
    out_flat = pl.pallas_call(
        functools.partial(norm_kernel, apply_sel=apply_sel, cin=cin, cout=cout),
        out_shape=jax.ShapeDtypeStruct((n, cout, m), jnp.float32),
        grid_spec=pltpu.PrefetchScalarGridSpec(
            num_scalar_prefetch=0,
            grid=(n,),
            in_specs=[x_spec] + sel_specs
                     + [w_spec, pl.BlockSpec((cout, 2), lambda i: (0, 0))],
            out_specs=pl.BlockSpec((1, cout, m), lambda i: (i, 0, 0)),
        ),
        compiler_params=cparams,
    )(x_flat, *sel_args, w_mat, affine)

    return out_flat.reshape(n, cout, ho, wo)                        # free reshape to NCHW


# ---------------------------------------------------------------------------
# Pure-JAX reference
# ---------------------------------------------------------------------------
def reference_forward(x_nchw, weight, stride):
    y = lax.conv_general_dilated(
        x_nchw, weight, window_strides=(stride, stride), padding="VALID",
        dimension_numbers=("NCHW", "OIHW", "NCHW"))
    mean = jnp.mean(y, axis=(0, 2, 3), keepdims=True)
    var = jnp.mean((y - mean) ** 2, axis=(0, 2, 3), keepdims=True)  # biased
    return (y - mean) / jnp.sqrt(var + EPS)


if __name__ == "__main__":
    # ShortCutLayer(cin=4, cout=8, stride=2) on a (2, 4, 16, 16) input.
    N, CIN, COUT, H, W, STRIDE = 2, 4, 8, 16, 16, 2

    key = jax.random.PRNGKey(0)
    kx, kw = jax.random.split(key)
    x = jax.random.normal(kx, (N, CIN, H, W), dtype=jnp.float32)

    # Deterministic conv weight init (kaiming-uniform-like, bound = 1/sqrt(fan_in))
    bound = 1.0 / (CIN ** 0.5)
    weight = jax.random.uniform(kw, (COUT, CIN, 1, 1), jnp.float32, -bound, bound)

    out = shortcut_layer_forward(x, weight, STRIDE)
    out = jax.block_until_ready(out)

    ref = reference_forward(x, weight, STRIDE)
    assert out.shape == (N, COUT, (H - 1) // STRIDE + 1, (W - 1) // STRIDE + 1)
    assert jnp.allclose(out, ref, rtol=1e-3, atol=1e-3), "mismatch vs JAX reference"

    print("KERNEL_OK")
</pallas_src>

<mosaic_0001>
module attributes {stable_mosaic.version = 11 : i64} {
  func.func @norm_kernel(%arg0: i32, %arg1: memref<1x4x256xf32, #tpu.memory_space<vmem>>, %arg2: memref<256x64xf32, #tpu.memory_space<vmem>>, %arg3: memref<8x4xf32, #tpu.memory_space<vmem>>, %arg4: memref<8x2xf32, #tpu.memory_space<vmem>>, %arg5: memref<1x8x64xf32, #tpu.memory_space<vmem>>) attributes {dimension_semantics = [#tpu.dimension_semantics<parallel>], iteration_bounds = array<i64: 2>, scalar_prefetch = 0 : i64, scratch_operands = 0 : i64, tpu.core_type = #tpu.core_type<tc>, window_params = [{transform_indices = @transform_0, window_bounds = array<i64: 1, 4, 256>}, {pipeline_mode = #tpu.pipeline_mode<synchronous>, transform_indices = @transform_1, window_bounds = array<i64: 256, 64>}, {pipeline_mode = #tpu.pipeline_mode<synchronous>, transform_indices = @transform_2, window_bounds = array<i64: 8, 4>}, {pipeline_mode = #tpu.pipeline_mode<synchronous>, transform_indices = @transform_3, window_bounds = array<i64: 8, 2>}, {transform_indices = @transform_4, window_bounds = array<i64: 1, 8, 64>}]} {
    %c0 = arith.constant 0 : index
    %c0_0 = arith.constant 0 : index
    %c0_1 = arith.constant 0 : index
    %0 = vector.load %arg1[%c0, %c0_0, %c0_1] : memref<1x4x256xf32, #tpu.memory_space<vmem>>, vector<1x4x256xf32>
    %1 = vector.shape_cast %0 : vector<1x4x256xf32> to vector<4x256xf32>
    %c0_2 = arith.constant 0 : index
    %c0_3 = arith.constant 0 : index
    %2 = vector.load %arg2[%c0_2, %c0_3] : memref<256x64xf32, #tpu.memory_space<vmem>>, vector<256x64xf32>
    %cst = arith.constant dense<0.000000e+00> : vector<4x64xf32>
    %3 = tpu.matmul %1, %2, %cst {dimension_numbers = #tpu.dot_dimension_numbers<[1], [0], [0], [1], [0, 0, 1, 1], [], []>} : vector<4x256xf32>, vector<256x64xf32>, vector<4x64xf32> -> vector<4x64xf32>
    %c0_4 = arith.constant 0 : index
    %c0_5 = arith.constant 0 : index
    %4 = vector.load %arg3[%c0_4, %c0_5] : memref<8x4xf32, #tpu.memory_space<vmem>>, vector<8x4xf32>
    %5 = vector.extract_strided_slice %4 {offsets = [0, 0], sizes = [8, 1], strides = [1, 1]} : vector<8x4xf32> to vector<8x1xf32>
    %6 = vector.extract_strided_slice %3 {offsets = [0, 0], sizes = [1, 64], strides = [1, 1]} : vector<4x64xf32> to vector<1x64xf32>
    %7 = vector.broadcast %5 : vector<8x1xf32> to vector<8x64xf32>
    %8 = vector.broadcast %6 : vector<1x64xf32> to vector<8x64xf32>
    %9 = arith.mulf %7, %8 : vector<8x64xf32>
    %10 = vector.extract_strided_slice %4 {offsets = [0, 1], sizes = [8, 1], strides = [1, 1]} : vector<8x4xf32> to vector<8x1xf32>
    %11 = vector.extract_strided_slice %3 {offsets = [1, 0], sizes = [1, 64], strides = [1, 1]} : vector<4x64xf32> to vector<1x64xf32>
    %12 = vector.broadcast %10 : vector<8x1xf32> to vector<8x64xf32>
    %13 = vector.broadcast %11 : vector<1x64xf32> to vector<8x64xf32>
    %14 = arith.mulf %12, %13 : vector<8x64xf32>
    %15 = arith.addf %9, %14 : vector<8x64xf32>
    %16 = vector.extract_strided_slice %4 {offsets = [0, 2], sizes = [8, 1], strides = [1, 1]} : vector<8x4xf32> to vector<8x1xf32>
    %17 = vector.extract_strided_slice %3 {offsets = [2, 0], sizes = [1, 64], strides = [1, 1]} : vector<4x64xf32> to vector<1x64xf32>
    %18 = vector.broadcast %16 : vector<8x1xf32> to vector<8x64xf32>
    %19 = vector.broadcast %17 : vector<1x64xf32> to vector<8x64xf32>
    %20 = arith.mulf %18, %19 : vector<8x64xf32>
    %21 = arith.addf %15, %20 : vector<8x64xf32>
    %22 = vector.extract_strided_slice %4 {offsets = [0, 3], sizes = [8, 1], strides = [1, 1]} : vector<8x4xf32> to vector<8x1xf32>
    %23 = vector.extract_strided_slice %3 {offsets = [3, 0], sizes = [1, 64], strides = [1, 1]} : vector<4x64xf32> to vector<1x64xf32>
    %24 = vector.broadcast %22 : vector<8x1xf32> to vector<8x64xf32>
    %25 = vector.broadcast %23 : vector<1x64xf32> to vector<8x64xf32>
    %26 = arith.mulf %24, %25 : vector<8x64xf32>
    %27 = arith.addf %21, %26 : vector<8x64xf32>
    %c0_6 = arith.constant 0 : index
    %c0_7 = arith.constant 0 : index
    %28 = vector.load %arg4[%c0_6, %c0_7] : memref<8x2xf32, #tpu.memory_space<vmem>>, vector<8x2xf32>
    %29 = vector.extract_strided_slice %28 {offsets = [0, 0], sizes = [8, 1], strides = [1, 1]} : vector<8x2xf32> to vector<8x1xf32>
    %30 = vector.broadcast %29 : vector<8x1xf32> to vector<8x64xf32>
    %31 = arith.mulf %27, %30 : vector<8x64xf32>
    %32 = vector.extract_strided_slice %28 {offsets = [0, 1], sizes = [8, 1], strides = [1, 1]} : vector<8x2xf32> to vector<8x1xf32>
    %33 = vector.broadcast %32 : vector<8x1xf32> to vector<8x64xf32>
    %34 = arith.addf %31, %33 : vector<8x64xf32>
    %c0_8 = arith.constant 0 : index
    %c0_9 = arith.constant 0 : index
    %c0_10 = arith.constant 0 : index
    %35 = vector.load %arg5[%c0_8, %c0_9, %c0_10] : memref<1x8x64xf32, #tpu.memory_space<vmem>>, vector<1x8x64xf32>
    %36 = vector.shape_cast %35 : vector<1x8x64xf32> to vector<8x64xf32>
    %37 = vector.shape_cast %34 : vector<8x64xf32> to vector<1x8x64xf32>
    tpu.vector_store %arg5[%c0_8, %c0_9, %c0_10], %37 {strides = array<i32>} : memref<1x8x64xf32, #tpu.memory_space<vmem>>, vector<1x8x64xf32>,
    return
  }
  func.func @transform_0(%arg0: i32) -> (i32, i32, i32) {
    %c0_i32 = arith.constant 0 : i32
    %c0_i32_0 = arith.constant 0 : i32
    %c0_i32_1 = arith.constant 0 : i32
    return %arg0, %c0_i32, %c0_i32_0 : i32, i32, i32
  }
  func.func @transform_1(%arg0: i32) -> (i32, i32) {
    %c0_i32 = arith.constant 0 : i32
    %c0_i32_0 = arith.constant 0 : i32
    %c0_i32_1 = arith.constant 0 : i32
    return %c0_i32, %c0_i32_0 : i32, i32
  }
  func.func @transform_2(%arg0: i32) -> (i32, i32) {
    %c0_i32 = arith.constant 0 : i32
    %c0_i32_0 = arith.constant 0 : i32
    %c0_i32_1 = arith.constant 0 : i32
    return %c0_i32, %c0_i32_0 : i32, i32
  }
  func.func @transform_3(%arg0: i32) -> (i32, i32) {
    %c0_i32 = arith.constant 0 : i32
    %c0_i32_0 = arith.constant 0 : i32
    %c0_i32_1 = arith.constant 0 : i32
    return %c0_i32, %c0_i32_0 : i32, i32
  }
  func.func @transform_4(%arg0: i32) -> (i32, i32, i32) {
    %c0_i32 = arith.constant 0 : i32
    %c0_i32_0 = arith.constant 0 : i32
    %c0_i32_1 = arith.constant 0 : i32
    return %arg0, %c0_i32, %c0_i32_0 : i32, i32, i32
  }
}

module attributes {stable_mosaic.version = 11 : i64} {
  func.func @stats_kernel(%arg0: i32, %arg1: memref<1x4x256xf32, #tpu.memory_space<vmem>>, %arg2: memref<256x64xf32, #tpu.memory_space<vmem>>, %arg3: memref<8x4xf32, #tpu.memory_space<vmem>>, %arg4: memref<1x8x2xf32, #tpu.memory_space<vmem>>) attributes {dimension_semantics = [#tpu.dimension_semantics<parallel>], iteration_bounds = array<i64: 2>, scalar_prefetch = 0 : i64, scratch_operands = 0 : i64, tpu.core_type = #tpu.core_type<tc>, window_params = [{transform_indices = @transform_0, window_bounds = array<i64: 1, 4, 256>}, {pipeline_mode = #tpu.pipeline_mode<synchronous>, transform_indices = @transform_1, window_bounds = array<i64: 256, 64>}, {pipeline_mode = #tpu.pipeline_mode<synchronous>, transform_indices = @transform_2, window_bounds = array<i64: 8, 4>}, {transform_indices = @transform_3, window_bounds = array<i64: 1, 8, 2>}]} {
    %c0 = arith.constant 0 : index
    %c0_0 = arith.constant 0 : index
    %c0_1 = arith.constant 0 : index
    %0 = vector.load %arg1[%c0, %c0_0, %c0_1] : memref<1x4x256xf32, #tpu.memory_space<vmem>>, vector<1x4x256xf32>
    %1 = vector.shape_cast %0 : vector<1x4x256xf32> to vector<4x256xf32>
    %c0_2 = arith.constant 0 : index
    %c0_3 = arith.constant 0 : index
    %2 = vector.load %arg2[%c0_2, %c0_3] : memref<256x64xf32, #tpu.memory_space<vmem>>, vector<256x64xf32>
    %cst = arith.constant dense<0.000000e+00> : vector<4x64xf32>
    %3 = tpu.matmul %1, %2, %cst {dimension_numbers = #tpu.dot_dimension_numbers<[1], [0], [0], [1], [0, 0, 1, 1], [], []>} : vector<4x256xf32>, vector<256x64xf32>, vector<4x64xf32> -> vector<4x64xf32>
    %c0_4 = arith.constant 0 : index
    %c0_5 = arith.constant 0 : index
    %4 = vector.load %arg3[%c0_4, %c0_5] : memref<8x4xf32, #tpu.memory_space<vmem>>, vector<8x4xf32>
    %5 = vector.extract_strided_slice %4 {offsets = [0, 0], sizes = [8, 1], strides = [1, 1]} : vector<8x4xf32> to vector<8x1xf32>
    %6 = vector.extract_strided_slice %3 {offsets = [0, 0], sizes = [1, 64], strides = [1, 1]} : vector<4x64xf32> to vector<1x64xf32>
    %7 = vector.broadcast %5 : vector<8x1xf32> to vector<8x64xf32>
    %8 = vector.broadcast %6 : vector<1x64xf32> to vector<8x64xf32>
    %9 = arith.mulf %7, %8 : vector<8x64xf32>
    %10 = vector.extract_strided_slice %4 {offsets = [0, 1], sizes = [8, 1], strides = [1, 1]} : vector<8x4xf32> to vector<8x1xf32>
    %11 = vector.extract_strided_slice %3 {offsets = [1, 0], sizes = [1, 64], strides = [1, 1]} : vector<4x64xf32> to vector<1x64xf32>
    %12 = vector.broadcast %10 : vector<8x1xf32> to vector<8x64xf32>
    %13 = vector.broadcast %11 : vector<1x64xf32> to vector<8x64xf32>
    %14 = arith.mulf %12, %13 : vector<8x64xf32>
    %15 = arith.addf %9, %14 : vector<8x64xf32>
    %16 = vector.extract_strided_slice %4 {offsets = [0, 2], sizes = [8, 1], strides = [1, 1]} : vector<8x4xf32> to vector<8x1xf32>
    %17 = vector.extract_strided_slice %3 {offsets = [2, 0], sizes = [1, 64], strides = [1, 1]} : vector<4x64xf32> to vector<1x64xf32>
    %18 = vector.broadcast %16 : vector<8x1xf32> to vector<8x64xf32>
    %19 = vector.broadcast %17 : vector<1x64xf32> to vector<8x64xf32>
    %20 = arith.mulf %18, %19 : vector<8x64xf32>
    %21 = arith.addf %15, %20 : vector<8x64xf32>
    %22 = vector.extract_strided_slice %4 {offsets = [0, 3], sizes = [8, 1], strides = [1, 1]} : vector<8x4xf32> to vector<8x1xf32>
    %23 = vector.extract_strided_slice %3 {offsets = [3, 0], sizes = [1, 64], strides = [1, 1]} : vector<4x64xf32> to vector<1x64xf32>
    %24 = vector.broadcast %22 : vector<8x1xf32> to vector<8x64xf32>
    %25 = vector.broadcast %23 : vector<1x64xf32> to vector<8x64xf32>
    %26 = arith.mulf %24, %25 : vector<8x64xf32>
    %27 = arith.addf %21, %26 : vector<8x64xf32>
    %cst_6 = arith.constant dense<0.000000e+00> : vector<8xf32>
    %28 = vector.multi_reduction <add>, %27, %cst_6 [1] : vector<8x64xf32> to vector<8xf32>
    %29 = vector.shape_cast %28 : vector<8xf32> to vector<8x1xf32>
    %30 = arith.mulf %27, %27 : vector<8x64xf32>
    %cst_7 = arith.constant dense<0.000000e+00> : vector<8xf32>
    %31 = vector.multi_reduction <add>, %30, %cst_7 [1] : vector<8x64xf32> to vector<8xf32>
    %32 = vector.shape_cast %31 : vector<8xf32> to vector<8x1xf32>
    %33 = tpu.concatenate %29, %32 in 1 : vector<8x1xf32>, vector<8x1xf32> -> vector<8x2xf32>
    %c0_8 = arith.constant 0 : index
    %c0_9 = arith.constant 0 : index
    %c0_10 = arith.constant 0 : index
    %34 = vector.load %arg4[%c0_8, %c0_9, %c0_10] : memref<1x8x2xf32, #tpu.memory_space<vmem>>, vector<1x8x2xf32>
    %35 = vector.shape_cast %34 : vector<1x8x2xf32> to vector<8x2xf32>
    %36 = vector.shape_cast %33 : vector<8x2xf32> to vector<1x8x2xf32>
    tpu.vector_store %arg4[%c0_8, %c0_9, %c0_10], %36 {strides = array<i32>} : memref<1x8x2xf32, #tpu.memory_space<vmem>>, vector<1x8x2xf32>,
    return
  }
  func.func @transform_0(%arg0: i32) -> (i32, i32, i32) {
    %c0_i32 = arith.constant 0 : i32
    %c0_i32_0 = arith.constant 0 : i32
    %c0_i32_1 = arith.constant 0 : i32
    return %arg0, %c0_i32, %c0_i32_0 : i32, i32, i32
  }
  func.func @transform_1(%arg0: i32) -> (i32, i32) {
    %c0_i32 = arith.constant 0 : i32
    %c0_i32_0 = arith.constant 0 : i32
    %c0_i32_1 = arith.constant 0 : i32
    return %c0_i32, %c0_i32_0 : i32, i32
  }
  func.func @transform_2(%arg0: i32) -> (i32, i32) {
    %c0_i32 = arith.constant 0 : i32
    %c0_i32_0 = arith.constant 0 : i32
    %c0_i32_1 = arith.constant 0 : i32
    return %c0_i32, %c0_i32_0 : i32, i32
  }
  func.func @transform_3(%arg0: i32) -> (i32, i32, i32) {
    %c0_i32 = arith.constant 0 : i32
    %c0_i32_0 = arith.constant 0 : i32
    %c0_i32_1 = arith.constant 0 : i32
    return %arg0, %c0_i32, %c0_i32_0 : i32, i32, i32
  }
}

</mosaic_0001>

<llo_original>
// kernel: shortcut_layer_forward.2
$region0: #{shortcut_layer_forward.2}
  #allocation0 [shape = 'u32[]', space=smem, size = 0x4, offset = 0x4, fixed_abs, tag = 'smem constant byte address 0x4 - core index']
  #allocation1 [shape = 'u32[72,128]{1,0:T(1,128)}', space=vmem, size = 0x9000, scoped, tag = 'internal scratch']
  %s0 = inlined_call_operand.vmem [shape: f32[2,4,256], index: 0, kind: input, shape index: {}]
  %s1 = inlined_call_operand.vmem [shape: f32[256,64], index: 1, kind: input, shape index: {}]
  %s2 = inlined_call_operand.vmem [shape: f32[8,4], index: 2, kind: input, shape index: {}]
  %s3 = inlined_call_operand.vmem [shape: f32[2,8,2], index: 3, kind: output, shape index: {}]
  %s4 = sld [smem:[#allocation0]]
  $region45: #{shortcut_layer_forward.2} parent=0
    _
  %s6 = ssub.s32 1, %s4
  %s7 = scalar_select 0, %s6, %s4
  loop: start=0, step=1, limit=4
  $region2: #{shortcut_layer_forward.2} parent=0 // loop_pre_header
    _
  $region3: #{shortcut_layer_forward.2} parent=0 // loop_header
    %s9 = sphi 0, %s13
    %p10 = scmp.ge.s32.totalorder %s9, 4
    %s19 = sphi 0, %s21
    %s22 = sphi 0, %s19
    %s23 = sphi 0, %s22
    %s39 = sphi 0, %s23
    %s43 = sphi 0, %s43
    %s45 = sphi 0, %s43
    %s46 = sphi 0, %s45
    %s60 = sphi 0, %s46
    %s64 = sphi 0, %s64
    %s66 = sphi 0, %s64
    %s67 = sphi 0, %s66
    %s81 = sphi 0, %s67
    %s87 = sphi 0, %s89
    %s90 = sphi 0, %s87
    %s91 = sphi 0, %s90
    %s107 = sphi 0, %s91
  $region4: #{shortcut_layer_forward.2} parent=0 // loop_header_branch
    %12 = sbr.rel (%p10) target = $region8
  $region5: #{shortcut_layer_forward.2} parent=0 // loop_body
    %s14 = ssub.s32 %s9, 1
    %s15 = ssub.s32 %s9, 2
    %s16 = sadd.s32 %s9, 1
    %s17 = ssub.s32 %s9, %s16
    %p18 = scmp.eq.s32.totalorder %s17, 0
    %s20 = sadd.s32 %s19, 1
    %s21 = scalar_select %p18, %s19, %s20
    %p24 = pneg %p18
    %p25 = scmp.eq.s32.totalorder %s9, 1
    %p26 = por %p24, %p25
    %p27 = scmp.ne.s32.totalorder %s19, %s22
    %p28 = scmp.eq.s32.totalorder %s9, 0
    %p29 = por %p27, %p28
    %p30 = scmp.ne.s32.totalorder %s19, %s22
    %p31 = scmp.eq.s32.totalorder %s14, 1
    %p32 = por %p30, %p31
    %p33 = scmp.ne.s32.totalorder %s22, %s23
    %p34 = scmp.eq.s32.totalorder %s14, 0
    %p35 = por %p33, %p34
    %p36 = scmp.ne.s32.totalorder %s22, %s23
    %p37 = scmp.eq.s32.totalorder %s15, 1
    %p38 = por %p36, %p37
    %p40 = scmp.ne.s32.totalorder %s23, %s39
    %p41 = scmp.eq.s32.totalorder %s15, 0
    %p42 = por %p40, %p41
    %s44 = sadd.s32 %s43, 1
    %p47 = scmp.eq.s32.totalorder %s9, 1
    %p48 = scmp.ne.s32.totalorder %s43, %s45
    %p49 = scmp.eq.s32.totalorder %s9, 0
    %p50 = por %p48, %p49
    %p51 = scmp.ne.s32.totalorder %s43, %s45
    %p52 = scmp.eq.s32.totalorder %s14, 1
    %p53 = por %p51, %p52
    %p54 = scmp.ne.s32.totalorder %s45, %s46
    %p55 = scmp.eq.s32.totalorder %s14, 0
    %p56 = por %p54, %p55
    %p57 = scmp.ne.s32.totalorder %s45, %s46
    %p58 = scmp.eq.s32.totalorder %s15, 1
    %p59 = por %p57, %p58
    %p61 = scmp.ne.s32.totalorder %s46, %s60
    %p62 = scmp.eq.s32.totalorder %s15, 0
    %p63 = por %p61, %p62
    %s65 = sadd.s32 %s64, 1
    %p68 = scmp.eq.s32.totalorder %s9, 1
    %p69 = scmp.ne.s32.totalorder %s64, %s66
    %p70 = scmp.eq.s32.totalorder %s9, 0
    %p71 = por %p69, %p70
    %p72 = scmp.ne.s32.totalorder %s64, %s66
    %p73 = scmp.eq.s32.totalorder %s14, 1
    %p74 = por %p72, %p73
    %p75 = scmp.ne.s32.totalorder %s66, %s67
    %p76 = scmp.eq.s32.totalorder %s14, 0
    %p77 = por %p75, %p76
    %p78 = scmp.ne.s32.totalorder %s66, %s67
    %p79 = scmp.eq.s32.totalorder %s15, 1
    %p80 = por %p78, %p79
    %p82 = scmp.ne.s32.totalorder %s67, %s81
    %p83 = scmp.eq.s32.totalorder %s15, 0
    %p84 = por %p82, %p83
    %s85 = ssub.s32 %s9, %s16
    %p86 = scmp.eq.s32.totalorder %s85, 0
    %s88 = sadd.s32 %s87, 1
    %s89 = scalar_select %p86, %s87, %s88
    %p92 = pneg %p86
    %p93 = scmp.eq.s32.totalorder %s9, 1
    %p94 = por %p92, %p93
    %p95 = scmp.ne.s32.totalorder %s87, %s90
    %p96 = scmp.eq.s32.totalorder %s9, 0
    %p97 = por %p95, %p96
    %p98 = scmp.ne.s32.totalorder %s87, %s90
    %p99 = scmp.eq.s32.totalorder %s14, 1
    %p100 = por %p98, %p99
    %p101 = scmp.ne.s32.totalorder %s90, %s91
    %p102 = scmp.eq.s32.totalorder %s14, 0
    %p103 = por %p101, %p102
    %p104 = scmp.ne.s32.totalorder %s90, %s91
    %p105 = scmp.eq.s32.totalorder %s15, 1
    %p106 = por %p104, %p105
    %p108 = scmp.ne.s32.totalorder %s91, %s107
    %p109 = scmp.eq.s32.totalorder %s15, 0
    %p110 = por %p108, %p109
    %p111 = scmp.le.s32.totalorder 1, %s9
    %p112 = scmp.lt.s32.totalorder %s9, 3
    %p113 = pnand %p111, %p112
    %p114 = pneg %p113
    // Predicated region
    $region9: #{shortcut_layer_forward.2} parent=5 // pred_check
      _
    $region10: #{shortcut_layer_forward.2} parent=5 // pred_check_branch
      %116 = sbr.rel (%p113) target = $region12
    $region11: #{shortcut_layer_forward.2} parent=5 // pred_region
      %s117 = ssub.s32 %s9, 1
      // Predicated region
      $region13: #{shortcut_layer_forward.2} parent=11 // pred_check
        %p118 = pneg %p56
      $region14: #{shortcut_layer_forward.2} parent=11 // pred_check_branch
        %120 = sbr.rel (%p118) target = $region16
      $region15: #{shortcut_layer_forward.2} parent=11 // pred_region
        _
      $region16: #{shortcut_layer_forward.2} parent=11 // pred_fallthru
        _
      // Predicated region
      $region17: #{shortcut_layer_forward.2} parent=11 // pred_check
        %p121 = pneg %p77
      $region18: #{shortcut_layer_forward.2} parent=11 // pred_check_branch
        %123 = sbr.rel (%p121) target = $region20
      $region19: #{shortcut_layer_forward.2} parent=11 // pred_region
        _
      $region20: #{shortcut_layer_forward.2} parent=11 // pred_fallthru
        _
    $region12: #{shortcut_layer_forward.2} parent=5 // pred_fallthru
      _
    %p124 = scmp.lt.s32.totalorder %s9, 2
    // Predicated region
    $region21: #{shortcut_layer_forward.2} parent=5 // pred_check
      %p125 = pneg %p124
    $region22: #{shortcut_layer_forward.2} parent=5 // pred_check_branch
      %127 = sbr.rel (%p125) target = $region24
    $region23: #{shortcut_layer_forward.2} parent=5 // pred_region
      // Predicated region
      $region25: #{shortcut_layer_forward.2} parent=23 // pred_check
        %p128 = pneg %p29
      $region26: #{shortcut_layer_forward.2} parent=23 // pred_check_branch
        %130 = sbr.rel (%p128) target = $region28
      $region27: #{shortcut_layer_forward.2} parent=23 // pred_region
        %p131 = scmp.lt.s32.totalorder %s9, 1
        %s132 = scalar_select %p131, %s9, 1
        %s133 = smul.addr %s132, 2
        %s134 = smul.addr %s133, 4
        %s135 = scalar_lea.vmem %s0, %s134
      $region28: #{shortcut_layer_forward.2} parent=23 // pred_fallthru
        _
    $region24: #{shortcut_layer_forward.2} parent=5 // pred_fallthru
      _
    %p136 = scmp.le.s32.totalorder 1, %s9
    %p137 = scmp.lt.s32.totalorder %s9, 3
    %p138 = pnand %p136, %p137
    %p139 = pneg %p138
    // Predicated region
    $region29: #{shortcut_layer_forward.2} parent=5 // pred_check
      _
    $region30: #{shortcut_layer_forward.2} parent=5 // pred_check_branch
      %141 = sbr.rel (%p138) target = $region32
    $region31: #{shortcut_layer_forward.2} parent=5 // pred_region
      %s142 = ssub.s32 %s9, 1
      %p143 = scmp.lt.s32.totalorder %s14, 1
      %s144 = scalar_select %p143, %s14, 1
      %s145 = smul.addr %s144, 2
      %s146 = smul.addr %s145, 4
      %s147 = scalar_lea.vmem %s0, %s146
      %p148 = pneg %p35
      %p149 = pneg %p32
      %p150 = pneg %p56
      %p151 = pneg %p53
      %p152 = pneg %p77
      %p153 = pneg %p74
      %p154 = pneg %p103
      %p155 = pneg %p100
      %p156 = scmp.lt.s32.totalorder %s14, 1
      %s157 = scalar_select %p156, %s14, 1
      %s158 = smul.addr %s157, 8
      %s159 = scalar_lea.vmem %s3, %s158
      %p160 = scmp.lt.s32.totalorder %s14, 1
      %s161 = scalar_select %p160, %s14, 1
      %s162 = smul.addr %s161, 2
      %s163 = smul.addr %s162, 4
      %s164 = scalar_lea.vmem %s0, %s163
      %p165 = scmp.lt.s32.totalorder %s14, 1
      %s166 = scalar_select %p165, %s14, 1
      %s167 = smul.addr %s166, 8
      %s168 = scalar_lea.vmem %s3, %s167
      %v169 = vld [vmem:[%s164] sm:$0xff]
      %v170 = vld [vmem:[%s1] sm:$0xff]
      %v171 = vld [vmem:[%s1 + $0x8] sm:$0xff]
      %v172 = vld [vmem:[%s1 + $0x10] sm:$0xff]
      %v173 = vld [vmem:[%s1 + $0x18] sm:$0xff]
      %v174 = vld [vmem:[%s1 + $0x20] sm:$0xff]
      %v175 = vld [vmem:[%s1 + $0x28] sm:$0xff]
      %v176 = vld [vmem:[%s1 + $0x30] sm:$0xff]
      %v177 = vld [vmem:[%s1 + $0x38] sm:$0xff]
      %v178 = vld [vmem:[%s1 + $0x40] sm:$0xff]
      %v179 = vld [vmem:[%s1 + $0x48] sm:$0xff]
      %v180 = vld [vmem:[%s1 + $0x50] sm:$0xff]
      %v181 = vld [vmem:[%s1 + $0x58] sm:$0xff]
      %v182 = vld [vmem:[%s1 + $0x60] sm:$0xff]
      %v183 = vld [vmem:[%s1 + $0x68] sm:$0xff]
      %v184 = vld [vmem:[%s1 + $0x70] sm:$0xff]
      %v185 = vld [vmem:[%s1 + $0x78] sm:$0xff]
      %v186 = vld [vmem:[%s1 + $0x80] sm:$0xff]
      %v187 = vld [vmem:[%s1 + $0x88] sm:$0xff]
      %v188 = vld [vmem:[%s1 + $0x90] sm:$0xff]
      %v189 = vld [vmem:[%s1 + $0x98] sm:$0xff]
      %v190 = vld [vmem:[%s1 + $0xa0] sm:$0xff]
      %v191 = vld [vmem:[%s1 + $0xa8] sm:$0xff]
      %v192 = vld [vmem:[%s1 + $0xb0] sm:$0xff]
      %v193 = vld [vmem:[%s1 + $0xb8] sm:$0xff]
      %v194 = vld [vmem:[%s1 + $0xc0] sm:$0xff]
      %v195 = vld [vmem:[%s1 + $0xc8] sm:$0xff]
      %v196 = vld [vmem:[%s1 + $0xd0] sm:$0xff]
      %v197 = vld [vmem:[%s1 + $0xd8] sm:$0xff]
      %v198 = vld [vmem:[%s1 + $0xe0] sm:$0xff]
      %v199 = vld [vmem:[%s1 + $0xe8] sm:$0xff]
      %v200 = vld [vmem:[%s1 + $0xf0] sm:$0xff]
      %v201 = vld [vmem:[%s1 + $0xf8] sm:$0xff]
      %203 = vst [vmem:[#allocation1] ss:$2 sm:$0xff] %v169
      %v204 = vld.sshfl [vmem:[#allocation1] sm:$0xff pattern:$0x75316420]
      %v205 = vld.sshfl [vmem:[#allocation1 + $0x8] sm:$0xff pattern:$0x75316420]
      %208 = vmatpush.msra.mxu0 %v185
      %209 = vmatpush.msra.mxu0 %v184
      %210 = vmatpush.msra.mxu0 %v183
      %211 = vmatpush.msra.mxu0 %v182
      %212 = vmatpush.msra.mxu0 %v181
      %213 = vmatpush.msra.mxu0 %v180
      %214 = vmatpush.msra.mxu0 %v179
      %215 = vmatpush.msra.mxu0 %v178
      %216 = vmatpush.msra.mxu0 %v177
      %217 = vmatpush.msra.mxu0 %v176
      %218 = vmatpush.msra.mxu0 %v175
      %219 = vmatpush.msra.mxu0 %v174
      %220 = vmatpush.msra.mxu0 %v173
      %221 = vmatpush.msra.mxu0 %v172
      %222 = vmatpush.msra.mxu0 %v171
      %223 = vmatpush.msra.mxu0 %v170
      %224 = vmatmul.f32.gmra.mxu0 %v204
      %v225 = vpop.f32.mrf.mxu0
      %v226 = vadd.f32 0.0, %v225
      %227 = vdwg.mxu0
      %228 = vmatpush.msra.mxu0 %v201
      %229 = vmatpush.msra.mxu0 %v200
      %230 = vmatpush.msra.mxu0 %v199
      %231 = vmatpush.msra.mxu0 %v198
      %232 = vmatpush.msra.mxu0 %v197
      %233 = vmatpush.msra.mxu0 %v196
      %234 = vmatpush.msra.mxu0 %v195
      %235 = vmatpush.msra.mxu0 %v194
      %236 = vmatpush.msra.mxu0 %v193
      %237 = vmatpush.msra.mxu0 %v192
      %238 = vmatpush.msra.mxu0 %v191
      %239 = vmatpush.msra.mxu0 %v190
      %240 = vmatpush.msra.mxu0 %v189
      %241 = vmatpush.msra.mxu0 %v188
      %242 = vmatpush.msra.mxu0 %v187
      %243 = vmatpush.msra.mxu0 %v186
      %244 = vmatmul.f32.gmra.mxu0 %v205
      %v245 = vpop.f32.mrf.mxu0
      %v246 = vadd.f32 %v226, %v245
      %247 = vdwg.mxu0
      %v248 = vld [vmem:[%s2] sm:$0xff]
      %250 = vset.pattern.permute.xlu0 0
      %251 = vperm.xlu0 %250, %v248
      %v252 = vpop.permute.xlu0 %251
      %v254 = vperm.slane %v246, 0
      %v255 = vmul.f32 %v252, %v254
      %256 = vset.pattern.permute.xlu0 1
      %257 = vperm.xlu0 %256, %v248
      %v258 = vpop.permute.xlu0 %257
      %v260 = vperm.slane %v246, 1
      %v261 = vmul.f32 %v258, %v260
      %v262 = vadd.f32 %v255, %v261
      %263 = vset.pattern.permute.xlu0 2
      %264 = vperm.xlu0 %263, %v248
      %v265 = vpop.permute.xlu0 %264
      %v267 = vperm.slane %v246, 2
      %v268 = vmul.f32 %v265, %v267
      %v269 = vadd.f32 %v262, %v268
      %270 = vset.pattern.permute.xlu0 3
      %271 = vperm.xlu0 %270, %v248
      %v272 = vpop.permute.xlu0 %271
      %v274 = vperm.slane %v246, 3
      %v275 = vmul.f32 %v272, %v274
      %v276 = vadd.f32 %v269, %v275
      %vm277 = vcmask 523264
      %v278 = vsel %vm277, %v276, 0.0
      %279 = vadd.xlane.f32.xlu0 %v278
      %v280 = vpop.xlane.xlu0 %279
      %v281 = vmul.f32 %v276, %v276
      %v282 = vsel %vm277, %v281, 0.0
      %283 = vadd.xlane.f32.xlu0 %v282
      %v284 = vpop.xlane.xlu0 %283
      %vm285 = vcmask 7168
      %v286 = vsel %vm285, %v280, %v284
      %vm287 = vcmask 15360
      %288 = vst.msk [vmem:[%s168] sm:$0xff] %vm287, %v286
      %p289 = scmp.lt.s32.totalorder %s14, 1
      %s290 = scalar_select %p289, %s14, 1
      %s291 = smul.addr %s290, 8
      %s292 = scalar_lea.vmem %s3, %s291
      // Predicated region
      $region33: #{shortcut_layer_forward.2} parent=31 // pred_check
        %p293 = pneg %p100
      $region34: #{shortcut_layer_forward.2} parent=31 // pred_check_branch
        %295 = sbr.rel (%p293) target = $region36
      $region35: #{shortcut_layer_forward.2} parent=31 // pred_region
        _
      $region36: #{shortcut_layer_forward.2} parent=31 // pred_fallthru
        _
    $region32: #{shortcut_layer_forward.2} parent=5 // pred_fallthru
      _
    %p296 = scmp.le.s32.totalorder 2, %s9
    // Predicated region
    $region37: #{shortcut_layer_forward.2} parent=5 // pred_check
      %p297 = pneg %p296
    $region38: #{shortcut_layer_forward.2} parent=5 // pred_check_branch
      %299 = sbr.rel (%p297) target = $region40
    $region39: #{shortcut_layer_forward.2} parent=5 // pred_region
      %s300 = ssub.s32 %s9, 2
      // Predicated region
      $region41: #{shortcut_layer_forward.2} parent=39 // pred_check
        %p301 = pneg %p106
      $region42: #{shortcut_layer_forward.2} parent=39 // pred_check_branch
        %303 = sbr.rel (%p301) target = $region44
      $region43: #{shortcut_layer_forward.2} parent=39 // pred_region
        %p304 = scmp.lt.s32.totalorder %s15, 1
        %s305 = scalar_select %p304, %s15, 1
        %s306 = smul.addr %s305, 8
        %s307 = scalar_lea.vmem %s3, %s306
      $region44: #{shortcut_layer_forward.2} parent=39 // pred_fallthru
        _
    $region40: #{shortcut_layer_forward.2} parent=5 // pred_fallthru
      _
  $region6: #{shortcut_layer_forward.2} parent=0 // loop_footer
    %s13 = sadd.s32 1, %s9
  $region7: #{shortcut_layer_forward.2} parent=0 // loop_footer_branch
    %8 = sbr.rel target = $region3
  $region8: #{shortcut_layer_forward.2} parent=0 // loop_exit
    _

// kernel: shortcut_layer_forward.3
$region0: #{shortcut_layer_forward.3}
  #allocation0 [shape = 'u32[]', space=smem, size = 0x4, offset = 0x4, fixed_abs, tag = 'smem constant byte address 0x4 - core index']
  #allocation1 [shape = 'u32[72,128]{1,0:T(1,128)}', space=vmem, size = 0x9000, scoped, tag = 'internal scratch']
  %s0 = inlined_call_operand.vmem [shape: f32[2,4,256], index: 0, kind: input, shape index: {}]
  %s1 = inlined_call_operand.vmem [shape: f32[256,64], index: 1, kind: input, shape index: {}]
  %s2 = inlined_call_operand.vmem [shape: f32[8,4], index: 2, kind: input, shape index: {}]
  %s3 = inlined_call_operand.vmem [shape: f32[8,2], index: 3, kind: input, shape index: {}]
  %s4 = inlined_call_operand.vmem [shape: f32[2,8,64], index: 4, kind: output, shape index: {}]
  %s5 = sld [smem:[#allocation0]]
  $region49: #{shortcut_layer_forward.3} parent=0
    _
  %s7 = ssub.s32 1, %s5
  %s8 = scalar_select 0, %s7, %s5
  loop: start=0, step=1, limit=4
  $region2: #{shortcut_layer_forward.3} parent=0 // loop_pre_header
    _
  $region3: #{shortcut_layer_forward.3} parent=0 // loop_header
    %s10 = sphi 0, %s14
    %p11 = scmp.ge.s32.totalorder %s10, 4
    %s20 = sphi 0, %s22
    %s23 = sphi 0, %s20
    %s24 = sphi 0, %s23
    %s40 = sphi 0, %s24
    %s44 = sphi 0, %s44
    %s46 = sphi 0, %s44
    %s47 = sphi 0, %s46
    %s61 = sphi 0, %s47
    %s65 = sphi 0, %s65
    %s67 = sphi 0, %s65
    %s68 = sphi 0, %s67
    %s82 = sphi 0, %s68
    %s86 = sphi 0, %s86
    %s88 = sphi 0, %s86
    %s89 = sphi 0, %s88
    %s103 = sphi 0, %s89
    %s109 = sphi 0, %s111
    %s112 = sphi 0, %s109
    %s113 = sphi 0, %s112
    %s129 = sphi 0, %s113
  $region4: #{shortcut_layer_forward.3} parent=0 // loop_header_branch
    %13 = sbr.rel (%p11) target = $region8
  $region5: #{shortcut_layer_forward.3} parent=0 // loop_body
    %s15 = ssub.s32 %s10, 1
    %s16 = ssub.s32 %s10, 2
    %s17 = sadd.s32 %s10, 1
    %s18 = ssub.s32 %s10, %s17
    %p19 = scmp.eq.s32.totalorder %s18, 0
    %s21 = sadd.s32 %s20, 1
    %s22 = scalar_select %p19, %s20, %s21
    %p25 = pneg %p19
    %p26 = scmp.eq.s32.totalorder %s10, 1
    %p27 = por %p25, %p26
    %p28 = scmp.ne.s32.totalorder %s20, %s23
    %p29 = scmp.eq.s32.totalorder %s10, 0
    %p30 = por %p28, %p29
    %p31 = scmp.ne.s32.totalorder %s20, %s23
    %p32 = scmp.eq.s32.totalorder %s15, 1
    %p33 = por %p31, %p32
    %p34 = scmp.ne.s32.totalorder %s23, %s24
    %p35 = scmp.eq.s32.totalorder %s15, 0
    %p36 = por %p34, %p35
    %p37 = scmp.ne.s32.totalorder %s23, %s24
    %p38 = scmp.eq.s32.totalorder %s16, 1
    %p39 = por %p37, %p38
    %p41 = scmp.ne.s32.totalorder %s24, %s40
    %p42 = scmp.eq.s32.totalorder %s16, 0
    %p43 = por %p41, %p42
    %s45 = sadd.s32 %s44, 1
    %p48 = scmp.eq.s32.totalorder %s10, 1
    %p49 = scmp.ne.s32.totalorder %s44, %s46
    %p50 = scmp.eq.s32.totalorder %s10, 0
    %p51 = por %p49, %p50
    %p52 = scmp.ne.s32.totalorder %s44, %s46
    %p53 = scmp.eq.s32.totalorder %s15, 1
    %p54 = por %p52, %p53
    %p55 = scmp.ne.s32.totalorder %s46, %s47
    %p56 = scmp.eq.s32.totalorder %s15, 0
    %p57 = por %p55, %p56
    %p58 = scmp.ne.s32.totalorder %s46, %s47
    %p59 = scmp.eq.s32.totalorder %s16, 1
    %p60 = por %p58, %p59
    %p62 = scmp.ne.s32.totalorder %s47, %s61
    %p63 = scmp.eq.s32.totalorder %s16, 0
    %p64 = por %p62, %p63
    %s66 = sadd.s32 %s65, 1
    %p69 = scmp.eq.s32.totalorder %s10, 1
    %p70 = scmp.ne.s32.totalorder %s65, %s67
    %p71 = scmp.eq.s32.totalorder %s10, 0
    %p72 = por %p70, %p71
    %p73 = scmp.ne.s32.totalorder %s65, %s67
    %p74 = scmp.eq.s32.totalorder %s15, 1
    %p75 = por %p73, %p74
    %p76 = scmp.ne.s32.totalorder %s67, %s68
    %p77 = scmp.eq.s32.totalorder %s15, 0
    %p78 = por %p76, %p77
    %p79 = scmp.ne.s32.totalorder %s67, %s68
    %p80 = scmp.eq.s32.totalorder %s16, 1
    %p81 = por %p79, %p80
    %p83 = scmp.ne.s32.totalorder %s68, %s82
    %p84 = scmp.eq.s32.totalorder %s16, 0
    %p85 = por %p83, %p84
    %s87 = sadd.s32 %s86, 1
    %p90 = scmp.eq.s32.totalorder %s10, 1
    %p91 = scmp.ne.s32.totalorder %s86, %s88
    %p92 = scmp.eq.s32.totalorder %s10, 0
    %p93 = por %p91, %p92
    %p94 = scmp.ne.s32.totalorder %s86, %s88
    %p95 = scmp.eq.s32.totalorder %s15, 1
    %p96 = por %p94, %p95
    %p97 = scmp.ne.s32.totalorder %s88, %s89
    %p98 = scmp.eq.s32.totalorder %s15, 0
    %p99 = por %p97, %p98
    %p100 = scmp.ne.s32.totalorder %s88, %s89
    %p101 = scmp.eq.s32.totalorder %s16, 1
    %p102 = por %p100, %p101
    %p104 = scmp.ne.s32.totalorder %s89, %s103
    %p105 = scmp.eq.s32.totalorder %s16, 0
    %p106 = por %p104, %p105
    %s107 = ssub.s32 %s10, %s17
    %p108 = scmp.eq.s32.totalorder %s107, 0
    %s110 = sadd.s32 %s109, 1
    %s111 = scalar_select %p108, %s109, %s110
    %p114 = pneg %p108
    %p115 = scmp.eq.s32.totalorder %s10, 1
    %p116 = por %p114, %p115
    %p117 = scmp.ne.s32.totalorder %s109, %s112
    %p118 = scmp.eq.s32.totalorder %s10, 0
    %p119 = por %p117, %p118
    %p120 = scmp.ne.s32.totalorder %s109, %s112
    %p121 = scmp.eq.s32.totalorder %s15, 1
    %p122 = por %p120, %p121
    %p123 = scmp.ne.s32.totalorder %s112, %s113
    %p124 = scmp.eq.s32.totalorder %s15, 0
    %p125 = por %p123, %p124
    %p126 = scmp.ne.s32.totalorder %s112, %s113
    %p127 = scmp.eq.s32.totalorder %s16, 1
    %p128 = por %p126, %p127
    %p130 = scmp.ne.s32.totalorder %s113, %s129
    %p131 = scmp.eq.s32.totalorder %s16, 0
    %p132 = por %p130, %p131
    %p133 = scmp.le.s32.totalorder 1, %s10
    %p134 = scmp.lt.s32.totalorder %s10, 3
    %p135 = pnand %p133, %p134
    %p136 = pneg %p135
    // Predicated region
    $region9: #{shortcut_layer_forward.3} parent=5 // pred_check
      _
    $region10: #{shortcut_layer_forward.3} parent=5 // pred_check_branch
      %138 = sbr.rel (%p135) target = $region12
    $region11: #{shortcut_layer_forward.3} parent=5 // pred_region
      %s139 = ssub.s32 %s10, 1
      // Predicated region
      $region13: #{shortcut_layer_forward.3} parent=11 // pred_check
        %p140 = pneg %p57
      $region14: #{shortcut_layer_forward.3} parent=11 // pred_check_branch
        %142 = sbr.rel (%p140) target = $region16
      $region15: #{shortcut_layer_forward.3} parent=11 // pred_region
        _
      $region16: #{shortcut_layer_forward.3} parent=11 // pred_fallthru
        _
      // Predicated region
      $region17: #{shortcut_layer_forward.3} parent=11 // pred_check
        %p143 = pneg %p78
      $region18: #{shortcut_layer_forward.3} parent=11 // pred_check_branch
        %145 = sbr.rel (%p143) target = $region20
      $region19: #{shortcut_layer_forward.3} parent=11 // pred_region
        _
      $region20: #{shortcut_layer_forward.3} parent=11 // pred_fallthru
        _
      // Predicated region
      $region21: #{shortcut_layer_forward.3} parent=11 // pred_check
        %p146 = pneg %p99
      $region22: #{shortcut_layer_forward.3} parent=11 // pred_check_branch
        %148 = sbr.rel (%p146) target = $region24
      $region23: #{shortcut_layer_forward.3} parent=11 // pred_region
        _
      $region24: #{shortcut_layer_forward.3} parent=11 // pred_fallthru
        _
    $region12: #{shortcut_layer_forward.3} parent=5 // pred_fallthru
      _
    %p149 = scmp.lt.s32.totalorder %s10, 2
    // Predicated region
    $region25: #{shortcut_layer_forward.3} parent=5 // pred_check
      %p150 = pneg %p149
    $region26: #{shortcut_layer_forward.3} parent=5 // pred_check_branch
      %152 = sbr.rel (%p150) target = $region28
    $region27: #{shortcut_layer_forward.3} parent=5 // pred_region
      // Predicated region
      $region29: #{shortcut_layer_forward.3} parent=27 // pred_check
        %p153 = pneg %p30
      $region30: #{shortcut_layer_forward.3} parent=27 // pred_check_branch
        %155 = sbr.rel (%p153) target = $region32
      $region31: #{shortcut_layer_forward.3} parent=27 // pred_region
        %p156 = scmp.lt.s32.totalorder %s10, 1
        %s157 = scalar_select %p156, %s10, 1
        %s158 = smul.addr %s157, 2
        %s159 = smul.addr %s158, 4
        %s160 = scalar_lea.vmem %s0, %s159
      $region32: #{shortcut_layer_forward.3} parent=27 // pred_fallthru
        _
    $region28: #{shortcut_layer_forward.3} parent=5 // pred_fallthru
      _
    %p161 = scmp.le.s32.totalorder 1, %s10
    %p162 = scmp.lt.s32.totalorder %s10, 3
    %p163 = pnand %p161, %p162
    %p164 = pneg %p163
    // Predicated region
    $region33: #{shortcut_layer_forward.3} parent=5 // pred_check
      _
    $region34: #{shortcut_layer_forward.3} parent=5 // pred_check_branch
      %166 = sbr.rel (%p163) target = $region36
    $region35: #{shortcut_layer_forward.3} parent=5 // pred_region
      %s167 = ssub.s32 %s10, 1
      %p168 = scmp.lt.s32.totalorder %s15, 1
      %s169 = scalar_select %p168, %s15, 1
      %s170 = smul.addr %s169, 2
      %s171 = smul.addr %s170, 4
      %s172 = scalar_lea.vmem %s0, %s171
      %p173 = pneg %p36
      %p174 = pneg %p33
      %p175 = pneg %p57
      %p176 = pneg %p54
      %p177 = pneg %p78
      %p178 = pneg %p75
      %p179 = pneg %p99
      %p180 = pneg %p96
      %p181 = pneg %p125
      %p182 = pneg %p122
      %p183 = scmp.lt.s32.totalorder %s15, 1
      %s184 = scalar_select %p183, %s15, 1
      %s185 = smul.addr %s184, 8
      %s186 = scalar_lea.vmem %s4, %s185
      %p187 = scmp.lt.s32.totalorder %s15, 1
      %s188 = scalar_select %p187, %s15, 1
      %s189 = smul.addr %s188, 2
      %s190 = smul.addr %s189, 4
      %s191 = scalar_lea.vmem %s0, %s190
      %p192 = scmp.lt.s32.totalorder %s15, 1
      %s193 = scalar_select %p192, %s15, 1
      %s194 = smul.addr %s193, 8
      %s195 = scalar_lea.vmem %s4, %s194
      %v196 = vld [vmem:[%s191] sm:$0xff]
      %v197 = vld [vmem:[%s1] sm:$0xff]
      %v198 = vld [vmem:[%s1 + $0x8] sm:$0xff]
      %v199 = vld [vmem:[%s1 + $0x10] sm:$0xff]
      %v200 = vld [vmem:[%s1 + $0x18] sm:$0xff]
      %v201 = vld [vmem:[%s1 + $0x20] sm:$0xff]
      %v202 = vld [vmem:[%s1 + $0x28] sm:$0xff]
      %v203 = vld [vmem:[%s1 + $0x30] sm:$0xff]
      %v204 = vld [vmem:[%s1 + $0x38] sm:$0xff]
      %v205 = vld [vmem:[%s1 + $0x40] sm:$0xff]
      %v206 = vld [vmem:[%s1 + $0x48] sm:$0xff]
      %v207 = vld [vmem:[%s1 + $0x50] sm:$0xff]
      %v208 = vld [vmem:[%s1 + $0x58] sm:$0xff]
      %v209 = vld [vmem:[%s1 + $0x60] sm:$0xff]
      %v210 = vld [vmem:[%s1 + $0x68] sm:$0xff]
      %v211 = vld [vmem:[%s1 + $0x70] sm:$0xff]
      %v212 = vld [vmem:[%s1 + $0x78] sm:$0xff]
      %v213 = vld [vmem:[%s1 + $0x80] sm:$0xff]
      %v214 = vld [vmem:[%s1 + $0x88] sm:$0xff]
      %v215 = vld [vmem:[%s1 + $0x90] sm:$0xff]
      %v216 = vld [vmem:[%s1 + $0x98] sm:$0xff]
      %v217 = vld [vmem:[%s1 + $0xa0] sm:$0xff]
      %v218 = vld [vmem:[%s1 + $0xa8] sm:$0xff]
      %v219 = vld [vmem:[%s1 + $0xb0] sm:$0xff]
      %v220 = vld [vmem:[%s1 + $0xb8] sm:$0xff]
      %v221 = vld [vmem:[%s1 + $0xc0] sm:$0xff]
      %v222 = vld [vmem:[%s1 + $0xc8] sm:$0xff]
      %v223 = vld [vmem:[%s1 + $0xd0] sm:$0xff]
      %v224 = vld [vmem:[%s1 + $0xd8] sm:$0xff]
      %v225 = vld [vmem:[%s1 + $0xe0] sm:$0xff]
      %v226 = vld [vmem:[%s1 + $0xe8] sm:$0xff]
      %v227 = vld [vmem:[%s1 + $0xf0] sm:$0xff]
      %v228 = vld [vmem:[%s1 + $0xf8] sm:$0xff]
      %230 = vst [vmem:[#allocation1] ss:$2 sm:$0xff] %v196
      %v231 = vld.sshfl [vmem:[#allocation1] sm:$0xff pattern:$0x75316420]
      %v232 = vld.sshfl [vmem:[#allocation1 + $0x8] sm:$0xff pattern:$0x75316420]
      %235 = vmatpush.msra.mxu0 %v212
      %236 = vmatpush.msra.mxu0 %v211
      %237 = vmatpush.msra.mxu0 %v210
      %238 = vmatpush.msra.mxu0 %v209
      %239 = vmatpush.msra.mxu0 %v208
      %240 = vmatpush.msra.mxu0 %v207
      %241 = vmatpush.msra.mxu0 %v206
      %242 = vmatpush.msra.mxu0 %v205
      %243 = vmatpush.msra.mxu0 %v204
      %244 = vmatpush.msra.mxu0 %v203
      %245 = vmatpush.msra.mxu0 %v202
      %246 = vmatpush.msra.mxu0 %v201
      %247 = vmatpush.msra.mxu0 %v200
      %248 = vmatpush.msra.mxu0 %v199
      %249 = vmatpush.msra.mxu0 %v198
      %250 = vmatpush.msra.mxu0 %v197
      %251 = vmatmul.f32.gmra.mxu0 %v231
      %v252 = vpop.f32.mrf.mxu0
      %v253 = vadd.f32 0.0, %v252
      %254 = vdwg.mxu0
      %255 = vmatpush.msra.mxu0 %v228
      %256 = vmatpush.msra.mxu0 %v227
      %257 = vmatpush.msra.mxu0 %v226
      %258 = vmatpush.msra.mxu0 %v225
      %259 = vmatpush.msra.mxu0 %v224
      %260 = vmatpush.msra.mxu0 %v223
      %261 = vmatpush.msra.mxu0 %v222
      %262 = vmatpush.msra.mxu0 %v221
      %263 = vmatpush.msra.mxu0 %v220
      %264 = vmatpush.msra.mxu0 %v219
      %265 = vmatpush.msra.mxu0 %v218
      %266 = vmatpush.msra.mxu0 %v217
      %267 = vmatpush.msra.mxu0 %v216
      %268 = vmatpush.msra.mxu0 %v215
      %269 = vmatpush.msra.mxu0 %v214
      %270 = vmatpush.msra.mxu0 %v213
      %271 = vmatmul.f32.gmra.mxu0 %v232
      %v272 = vpop.f32.mrf.mxu0
      %v273 = vadd.f32 %v253, %v272
      %274 = vdwg.mxu0
      %v275 = vld [vmem:[%s2] sm:$0xff]
      %277 = vset.pattern.permute.xlu0 0
      %278 = vperm.xlu0 %277, %v275
      %v279 = vpop.permute.xlu0 %278
      %v281 = vperm.slane %v273, 0
      %v282 = vmul.f32 %v279, %v281
      %283 = vset.pattern.permute.xlu0 1
      %284 = vperm.xlu0 %283, %v275
      %v285 = vpop.permute.xlu0 %284
      %v287 = vperm.slane %v273, 1
      %v288 = vmul.f32 %v285, %v287
      %v289 = vadd.f32 %v282, %v288
      %290 = vset.pattern.permute.xlu0 2
      %291 = vperm.xlu0 %290, %v275
      %v292 = vpop.permute.xlu0 %291
      %v294 = vperm.slane %v273, 2
      %v295 = vmul.f32 %v292, %v294
      %v296 = vadd.f32 %v289, %v295
      %297 = vset.pattern.permute.xlu0 3
      %298 = vperm.xlu0 %297, %v275
      %v299 = vpop.permute.xlu0 %298
      %v301 = vperm.slane %v273, 3
      %v302 = vmul.f32 %v299, %v301
      %v303 = vadd.f32 %v296, %v302
      %v304 = vld [vmem:[%s3] sm:$0xff]
      %306 = vset.pattern.permute.xlu0 0
      %307 = vperm.xlu0 %306, %v304
      %v308 = vpop.permute.xlu0 %307
      %v310 = vmul.f32 %v303, %v308
      %311 = vset.pattern.permute.xlu0 1
      %312 = vperm.xlu0 %311, %v304
      %v313 = vpop.permute.xlu0 %312
      %v315 = vadd.f32 %v310, %v313
      %vm316 = vcmask 523264
      %317 = vst.msk [vmem:[%s195] sm:$0xff] %vm316, %v315
      %p318 = scmp.lt.s32.totalorder %s15, 1
      %s319 = scalar_select %p318, %s15, 1
      %s320 = smul.addr %s319, 8
      %s321 = scalar_lea.vmem %s4, %s320
      // Predicated region
      $region37: #{shortcut_layer_forward.3} parent=35 // pred_check
        %p322 = pneg %p122
      $region38: #{shortcut_layer_forward.3} parent=35 // pred_check_branch
        %324 = sbr.rel (%p322) target = $region40
      $region39: #{shortcut_layer_forward.3} parent=35 // pred_region
        _
      $region40: #{shortcut_layer_forward.3} parent=35 // pred_fallthru
        _
    $region36: #{shortcut_layer_forward.3} parent=5 // pred_fallthru
      _
    %p325 = scmp.le.s32.totalorder 2, %s10
    // Predicated region
    $region41: #{shortcut_layer_forward.3} parent=5 // pred_check
      %p326 = pneg %p325
    $region42: #{shortcut_layer_forward.3} parent=5 // pred_check_branch
      %328 = sbr.rel (%p326) target = $region44
    $region43: #{shortcut_layer_forward.3} parent=5 // pred_region
      %s329 = ssub.s32 %s10, 2
      // Predicated region
      $region45: #{shortcut_layer_forward.3} parent=43 // pred_check
        %p330 = pneg %p128
      $region46: #{shortcut_layer_forward.3} parent=43 // pred_check_branch
        %332 = sbr.rel (%p330) target = $region48
      $region47: #{shortcut_layer_forward.3} parent=43 // pred_region
        %p333 = scmp.lt.s32.totalorder %s16, 1
        %s334 = scalar_select %p333, %s16, 1
        %s335 = smul.addr %s334, 8
        %s336 = scalar_lea.vmem %s4, %s335
      $region48: #{shortcut_layer_forward.3} parent=43 // pred_fallthru
        _
    $region44: #{shortcut_layer_forward.3} parent=5 // pred_fallthru
      _
  $region6: #{shortcut_layer_forward.3} parent=0 // loop_footer
    %s14 = sadd.s32 1, %s10
  $region7: #{shortcut_layer_forward.3} parent=0 // loop_footer_branch
    %9 = sbr.rel target = $region3
  $region8: #{shortcut_layer_forward.3} parent=0 // loop_exit
    _

</llo_original>
